<compile_context>
chip_gen: v5e
topology: v5e:2x2
jax: 0.10.0
libtpu: 0.0.40
codegen_flags: <defaults>
</compile_context>

<pallas_src>
import functools
import math

import jax
import jax.numpy as jnp
from jax.experimental import pallas as pl
from jax.experimental.pallas import tpu as pltpu


def _complex_center_set_kernel(S, B, nonlinear, matmul_dtype,
                               emb_ref, w_ref, b_ref, out_ref):
    """One grid step = a tile of TG sets.

    emb_ref: (TG*B*S, D) rows ordered (set, batch, element); element index is
             contiguous so the set-max reduction is sublane aligned.
    w_ref:   (4, D, D)   pre-transposed in the wrapper (x @ w == x @ W.T).
    b_ref:   (4, D)      lane-dense bias pack (f32).
    out_ref: (TG*B, D)
    """
    rows, D = emb_ref.shape
    tgb = rows // S                       # TG * B

    def linear(a, k):
        # MXU operands in matmul_dtype (f32 or bf16), f32 accumulation.
        acc = jnp.dot(a.astype(matmul_dtype), w_ref[k],
                      preferred_element_type=jnp.float32)
        return acc + b_ref[k:k + 1, :]    # bias add stays f32

    x = emb_ref[...]

    h = jnp.maximum(linear(x, 0), 0.0)
    h = linear(h, 1)
    if nonlinear:
        h = jnp.maximum(h, 0.0)

    # torch.max(x, dim=0)[0]: reduce over the S set-member axis.  Each
    # (set, batch) owns S=8 contiguous rows -> whole-sublane reduce.
    agg = jnp.max(h.reshape(tgb, S, D), axis=1)            # (TG*B, D)

    h3 = jnp.maximum(linear(agg, 2), 0.0)
    out = linear(h3, 3)
    out_ref[...] = out.astype(out_ref.dtype)


def complex_center_set(embeddings, w_stack, b_stack, *, nonlinear=True,
                       matmul_dtype=jnp.float32, sets_per_tile=None):
    """embeddings: (S, B, D) single set, or (G, S, B, D) batch of G sets.
       w_stack: (4, D, D) in PyTorch layout (row k of W_k is an output unit).
       b_stack: (4, D) or (4, 1, D).
       Returns (B, D) for a single set, (G, B, D) for G sets."""
    single = embeddings.ndim == 3
    emb = embeddings[None] if single else embeddings
    G, S, B, D = emb.shape

    # Pre-transpose weights once (so the kernel never emits w.T) and cast to
    # the MXU operand dtype here so per-step weight DMA shrinks for bf16 too.
    w_t = jnp.transpose(w_stack, (0, 2, 1)).astype(matmul_dtype)      # (4, D, D)
    b_packed = jnp.reshape(b_stack, (4, D)).astype(jnp.float32)       # lane-dense

    # Rows ordered (set, batch, element): set members contiguous per batch.
    emb2d = jnp.transpose(emb, (0, 2, 1, 3)).reshape(G * B * S, D)
    emb2d = emb2d.astype(jnp.float32)

    # Enough sets per grid step to present >=128 rows to the MXU.
    if sets_per_tile is None:
        sets_per_tile = max(1, 128 // (B * S))
    TG = min(sets_per_tile, G)
    if (TG * B * S) % 8 != 0:
        TG = G                      # full-extent block is always layout-legal
    Gp = pl.cdiv(G, TG) * TG
    if Gp != G:                      # pad with dummy sets; their outputs are dropped
        pad_rows = (Gp - G) * B * S
        emb2d = jnp.concatenate(
            [emb2d, jnp.zeros((pad_rows, D), emb2d.dtype)], axis=0)

    rows_blk = TG * B * S
    kernel = functools.partial(
        _complex_center_set_kernel, S, B, nonlinear, matmul_dtype)

    out2d = pl.pallas_call(
        kernel,
        out_shape=jax.ShapeDtypeStruct((Gp * B, D), jnp.float32),
        grid=(Gp // TG,),
        in_specs=[
            pl.BlockSpec((rows_blk, D), lambda g: (g, 0)),       # activations
            pl.BlockSpec((4, D, D), lambda g: (0, 0, 0)),        # resident weights
            pl.BlockSpec((4, D), lambda g: (0, 0)),              # resident biases
        ],
        out_specs=pl.BlockSpec((TG * B, D), lambda g: (g, 0)),
        compiler_params=pltpu.CompilerParams(
            dimension_semantics=("parallel",)),   # shard sets across TCs (v7x)
    )(emb2d, w_t, b_packed)

    out = out2d[:G * B].reshape(G, B, D)
    return out[0] if single else out


def _reference(embeddings, w_stack, b_stack, *, nonlinear=True):
    """Pure-JAX reference mirroring the PyTorch forward (works for 3-D or 4-D)."""
    b = jnp.reshape(b_stack, (4, -1))
    h = jax.nn.relu(embeddings @ w_stack[0].T + b[0])
    h = h @ w_stack[1].T + b[1]
    if nonlinear:
        h = jax.nn.relu(h)
    agg = jnp.max(h, axis=-3)                 # torch.max(x, dim=0)[0] per set
    h3 = jax.nn.relu(agg @ w_stack[2].T + b[2])
    return h3 @ w_stack[3].T + b[3]


def init_params(dim, key):
    """Deterministic stand-in for the module __init__: (4*dim + 4, dim) slab,
    first 4*dim rows xavier_uniform_, last 4 rows (biases) zero."""
    fan_in, fan_out = dim, 4 * dim
    bound = math.sqrt(6.0 / (fan_in + fan_out))
    w_rows = jax.random.uniform(
        key, (4 * dim, dim), minval=-bound, maxval=bound, dtype=jnp.float32)
    layers = jnp.concatenate(
        [w_rows, jnp.zeros((4, dim), jnp.float32)], axis=0)
    w_stack = jnp.stack([layers[i * dim:(i + 1) * dim] for i in range(4)])  # (4, D, D)
    b_stack = layers[4 * dim:]                                              # (4, D)
    return layers, w_stack, b_stack


if __name__ == "__main__":
    dim = 32      # hidden size D
    S = 8         # set size (aggregated over, torch dim=0)
    B = 2         # batch
    G = 8         # number of independent sets for the batched path

    key = jax.random.PRNGKey(0)
    k_param, k_emb, k_bias = jax.random.split(key, 3)

    _, w_stack, _ = init_params(dim, k_param)
    # Non-zero biases so the bias path is actually exercised (module init is 0).
    b_stack = 0.1 * jax.random.normal(k_bias, (4, dim), dtype=jnp.float32)

    # 1) Single set, module-faithful f32 path: (S, B, D) -> (B, D).
    emb1 = jax.random.normal(k_emb, (S, B, dim), dtype=jnp.float32)
    out1 = jax.block_until_ready(complex_center_set(emb1, w_stack, b_stack))
    ref1 = _reference(emb1, w_stack, b_stack)
    assert out1.shape == (B, dim), out1.shape
    assert jnp.allclose(out1, ref1, atol=1e-5, rtol=1e-5), "single-set mismatch"

    # 2) Batched sets, gridded + parallel axis, f32 MXU: (G, S, B, D) -> (G, B, D).
    embG = jax.random.normal(k_emb, (G, S, B, dim), dtype=jnp.float32)
    outG = jax.block_until_ready(complex_center_set(embG, w_stack, b_stack))
    refG = _reference(embG, w_stack, b_stack)
    assert outG.shape == (G, B, dim), outG.shape
    assert jnp.allclose(outG, refG, atol=1e-5, rtol=1e-5), "batched mismatch"

    # 3) bf16 MXU operands with f32 accumulation (v6e/v7x fast path).
    outG_bf16 = jax.block_until_ready(
        complex_center_set(embG, w_stack, b_stack, matmul_dtype=jnp.bfloat16))
    assert jnp.allclose(outG_bf16, refG, atol=1e-1, rtol=1e-1), "bf16 mismatch"

    # 4) nonlinear=False branch.
    out_nl = jax.block_until_ready(
        complex_center_set(emb1, w_stack, b_stack, nonlinear=False))
    ref_nl = _reference(emb1, w_stack, b_stack, nonlinear=False)
    assert jnp.allclose(out_nl, ref_nl, atol=1e-5, rtol=1e-5), "nonlinear=False mismatch"

    print("KERNEL_OK")
</pallas_src>

<mosaic_0001>
module attributes {stable_mosaic.version = 11 : i64} {
  func.func @_complex_center_set_kernel(%arg0: i32, %arg1: memref<16x32xf32, #tpu.memory_space<vmem>>, %arg2: memref<4x32x32xf32, #tpu.memory_space<vmem>>, %arg3: memref<4x32xf32, #tpu.memory_space<vmem>>, %arg4: memref<2x32xf32, #tpu.memory_space<vmem>>) attributes {dimension_semantics = [#tpu.dimension_semantics<parallel>], iteration_bounds = array<i64: 1>, scalar_prefetch = 0 : i64, scratch_operands = 0 : i64, tpu.core_type = #tpu.core_type<tc>, window_params = [{transform_indices = @transform_0, window_bounds = array<i64: 16, 32>}, {pipeline_mode = #tpu.pipeline_mode<synchronous>, transform_indices = @transform_1, window_bounds = array<i64: 4, 32, 32>}, {pipeline_mode = #tpu.pipeline_mode<synchronous>, transform_indices = @transform_2, window_bounds = array<i64: 4, 32>}, {transform_indices = @transform_3, window_bounds = array<i64: 2, 32>}]} {
    %c0 = arith.constant 0 : index
    %c0_0 = arith.constant 0 : index
    %0 = vector.load %arg1[%c0, %c0_0] : memref<16x32xf32, #tpu.memory_space<vmem>>, vector<16x32xf32>
    %c0_1 = arith.constant 0 : index
    %c0_2 = arith.constant 0 : index
    %c0_3 = arith.constant 0 : index
    %1 = vector.load %arg2[%c0_1, %c0_2, %c0_3] : memref<4x32x32xf32, #tpu.memory_space<vmem>>, vector<1x32x32xf32>
    %2 = vector.shape_cast %1 : vector<1x32x32xf32> to vector<32x32xf32>
    %cst = arith.constant dense<0.000000e+00> : vector<16x32xf32>
    %3 = tpu.matmul %0, %2, %cst {dimension_numbers = #tpu.dot_dimension_numbers<[1], [0], [0], [1], [0, 0, 1, 1], [], []>} : vector<16x32xf32>, vector<32x32xf32>, vector<16x32xf32> -> vector<16x32xf32>
    %c0_4 = arith.constant 0 : index
    %c0_5 = arith.constant 0 : index
    %4 = vector.load %arg3[%c0_4, %c0_5] : memref<4x32xf32, #tpu.memory_space<vmem>>, vector<1x32xf32>
    %5 = vector.broadcast %4 : vector<1x32xf32> to vector<16x32xf32>
    %6 = arith.addf %3, %5 : vector<16x32xf32>
    %cst_6 = arith.constant 0.000000e+00 : f32
    %7 = vector.broadcast %cst_6 : f32 to vector<16x32xf32>
    %8 = arith.maximumf %6, %7 : vector<16x32xf32>
    %c1 = arith.constant 1 : index
    %c0_7 = arith.constant 0 : index
    %c0_8 = arith.constant 0 : index
    %9 = vector.load %arg2[%c1, %c0_7, %c0_8] : memref<4x32x32xf32, #tpu.memory_space<vmem>>, vector<1x32x32xf32>
    %10 = vector.shape_cast %9 : vector<1x32x32xf32> to vector<32x32xf32>
    %cst_9 = arith.constant dense<0.000000e+00> : vector<16x32xf32>
    %11 = tpu.matmul %8, %10, %cst_9 {dimension_numbers = #tpu.dot_dimension_numbers<[1], [0], [0], [1], [0, 0, 1, 1], [], []>} : vector<16x32xf32>, vector<32x32xf32>, vector<16x32xf32> -> vector<16x32xf32>
    %c1_10 = arith.constant 1 : index
    %c0_11 = arith.constant 0 : index
    %12 = vector.load %arg3[%c1_10, %c0_11] : memref<4x32xf32, #tpu.memory_space<vmem>>, vector<1x32xf32>
    %13 = vector.broadcast %12 : vector<1x32xf32> to vector<16x32xf32>
    %14 = arith.addf %11, %13 : vector<16x32xf32>
    %cst_12 = arith.constant 0.000000e+00 : f32
    %15 = vector.broadcast %cst_12 : f32 to vector<16x32xf32>
    %16 = arith.maximumf %14, %15 : vector<16x32xf32>
    %17 = vector.shape_cast %16 : vector<16x32xf32> to vector<2x8x32xf32>
    %cst_13 = arith.constant dense<0xFF800000> : vector<2x32xf32>
    %18 = vector.multi_reduction <maximumf>, %17, %cst_13 [1] : vector<2x8x32xf32> to vector<2x32xf32>
    %c2 = arith.constant 2 : index
    %c0_14 = arith.constant 0 : index
    %c0_15 = arith.constant 0 : index
    %19 = vector.load %arg2[%c2, %c0_14, %c0_15] : memref<4x32x32xf32, #tpu.memory_space<vmem>>, vector<1x32x32xf32>
    %20 = vector.shape_cast %19 : vector<1x32x32xf32> to vector<32x32xf32>
    %cst_16 = arith.constant dense<0.000000e+00> : vector<2x32xf32>
    %21 = tpu.matmul %18, %20, %cst_16 {dimension_numbers = #tpu.dot_dimension_numbers<[1], [0], [0], [1], [0, 0, 1, 1], [], []>} : vector<2x32xf32>, vector<32x32xf32>, vector<2x32xf32> -> vector<2x32xf32>
    %c2_17 = arith.constant 2 : index
    %c0_18 = arith.constant 0 : index
    %22 = vector.load %arg3[%c2_17, %c0_18] : memref<4x32xf32, #tpu.memory_space<vmem>>, vector<1x32xf32>
    %23 = vector.broadcast %22 : vector<1x32xf32> to vector<2x32xf32>
    %24 = arith.addf %21, %23 : vector<2x32xf32>
    %cst_19 = arith.constant 0.000000e+00 : f32
    %25 = vector.broadcast %cst_19 : f32 to vector<2x32xf32>
    %26 = arith.maximumf %24, %25 : vector<2x32xf32>
    %c3 = arith.constant 3 : index
    %c0_20 = arith.constant 0 : index
    %c0_21 = arith.constant 0 : index
    %27 = vector.load %arg2[%c3, %c0_20, %c0_21] : memref<4x32x32xf32, #tpu.memory_space<vmem>>, vector<1x32x32xf32>
    %28 = vector.shape_cast %27 : vector<1x32x32xf32> to vector<32x32xf32>
    %cst_22 = arith.constant dense<0.000000e+00> : vector<2x32xf32>
    %29 = tpu.matmul %26, %28, %cst_22 {dimension_numbers = #tpu.dot_dimension_numbers<[1], [0], [0], [1], [0, 0, 1, 1], [], []>} : vector<2x32xf32>, vector<32x32xf32>, vector<2x32xf32> -> vector<2x32xf32>
    %c3_23 = arith.constant 3 : index
    %c0_24 = arith.constant 0 : index
    %30 = vector.load %arg3[%c3_23, %c0_24] : memref<4x32xf32, #tpu.memory_space<vmem>>, vector<1x32xf32>
    %31 = vector.broadcast %30 : vector<1x32xf32> to vector<2x32xf32>
    %32 = arith.addf %29, %31 : vector<2x32xf32>
    %c0_25 = arith.constant 0 : index
    %c0_26 = arith.constant 0 : index
    %33 = vector.load %arg4[%c0_25, %c0_26] : memref<2x32xf32, #tpu.memory_space<vmem>>, vector<2x32xf32>
    tpu.vector_store %arg4[%c0_25, %c0_26], %32 {strides = array<i32>} : memref<2x32xf32, #tpu.memory_space<vmem>>, vector<2x32xf32>,
    return
  }
  func.func @transform_0(%arg0: i32) -> (i32, i32) {
    %c0_i32 = arith.constant 0 : i32
    %c0_i32_0 = arith.constant 0 : i32
    return %arg0, %c0_i32 : i32, i32
  }
  func.func @transform_1(%arg0: i32) -> (i32, i32, i32) {
    %c0_i32 = arith.constant 0 : i32
    %c0_i32_0 = arith.constant 0 : i32
    %c0_i32_1 = arith.constant 0 : i32
    %c0_i32_2 = arith.constant 0 : i32
    return %c0_i32, %c0_i32_0, %c0_i32_1 : i32, i32, i32
  }
  func.func @transform_2(%arg0: i32) -> (i32, i32) {
    %c0_i32 = arith.constant 0 : i32
    %c0_i32_0 = arith.constant 0 : i32
    %c0_i32_1 = arith.constant 0 : i32
    return %c0_i32, %c0_i32_0 : i32, i32
  }
  func.func @transform_3(%arg0: i32) -> (i32, i32) {
    %c0_i32 = arith.constant 0 : i32
    %c0_i32_0 = arith.constant 0 : i32
    return %arg0, %c0_i32 : i32, i32
  }
}

</mosaic_0001>

<llo_original>
// kernel: tpu_custom_call.1
$region0: #{tpu_custom_call.1}
  #allocation0 [shape = 'u32[]', space=smem, size = 0x4, offset = 0x4, fixed_abs, tag = 'smem constant byte address 0x4 - core index']
  #allocation1 [shape = 'u32[72,128]{1,0:T(1,128)}', space=vmem, size = 0x9000, scoped, tag = 'internal scratch']
  %s0 = inlined_call_operand.hbm [shape: f32[16,32], index: 0, kind: input, shape index: {}]
  %s1 = inlined_call_operand.hbm [shape: f32[4,32,32], index: 1, kind: input, shape index: {}]
  %s2 = inlined_call_operand.hbm [shape: f32[4,32], index: 2, kind: input, shape index: {}]
  %s3 = inlined_call_operand.hbm [shape: f32[2,32], index: 3, kind: output, shape index: {}]
  %s4 = sld [smem:[#allocation0]]
  $region34: #{tpu_custom_call.1} parent=0
    _
  %s6 = ssub.s32 1, %s4
  %s7 = scalar_select 0, %s6, %s4
  $region1: #{tpu_custom_call.1} parent=0
    #allocation2 [shape = 'u8[8192]{0}', space=vmem, size = 0x2000, scoped, tag = 'input window, operand 0, single buffered']
    #allocation3 [shape = 's32[1]{0}', space=sflag, size = 0x4, scoped, tag = 'scoped memory for tpu_custom_call.1']
    #allocation4 [shape = 's32[1]{0}', space=sflag, size = 0x4, scoped, tag = 'scoped memory for tpu_custom_call.1']
    #allocation5 [shape = 'u8[65536]{0}', space=vmem, size = 0x10000, scoped, tag = 'input window, operand 1, single buffered']
    #allocation6 [shape = 's32[1]{0}', space=sflag, size = 0x4, scoped, tag = 'scoped memory for tpu_custom_call.1']
    #allocation7 [shape = 'u8[2048]{0}', space=vmem, size = 0x800, scoped, tag = 'input window, operand 2, single buffered']
    #allocation8 [shape = 'u8[1024]{0}', space=vmem, size = 0x400, scoped, tag = 'output window, operand 0, single buffered']
    %8 = vsyncpa [#allocation3], 0
    %9 = vsyncpa [#allocation6], 0
    %10 = vsyncpa [#allocation4], 0
    // Predicated region
    $region2: #{tpu_custom_call.1} parent=1 // pred_check
      _
    $region3: #{tpu_custom_call.1} parent=1 // pred_check_branch
      %12 = sbr.rel (0) target = $region5
    $region4: #{tpu_custom_call.1} parent=1 // pred_region
      %14 = vsyncadd [#allocation3], 0
      %s15 = sshll.u32 %s0, 4
      %s16 = int_to_ptr.hbm [resolvable:$true] %s15
      %s17 = sshll.u32 [#allocation2], 4
      %s18 = int_to_ptr.vmem [resolvable:$true] %s17
      %23 = dma.hbm_to_vmem [thread:$0]  %s16, 256, %s18, [#allocation3], 128, 128, 8
    $region5: #{tpu_custom_call.1} parent=1 // pred_fallthru
      _
    // Predicated region
    $region6: #{tpu_custom_call.1} parent=1 // pred_check
      _
    $region7: #{tpu_custom_call.1} parent=1 // pred_check_branch
      %25 = sbr.rel (0) target = $region9
    $region8: #{tpu_custom_call.1} parent=1 // pred_region
      %27 = vsyncadd [#allocation6], 0
      %s28 = sshll.u32 %s1, 4
      %s29 = int_to_ptr.hbm [resolvable:$true] %s28
      %s30 = sshll.u32 [#allocation5], 4
      %s31 = int_to_ptr.vmem [resolvable:$true] %s30
      %36 = dma.hbm_to_vmem [thread:$0]  %s29, 2048, %s31, [#allocation6], 128, 128, 8
    $region9: #{tpu_custom_call.1} parent=1 // pred_fallthru
      _
    // Predicated region
    $region10: #{tpu_custom_call.1} parent=1 // pred_check
      _
    $region11: #{tpu_custom_call.1} parent=1 // pred_check_branch
      %38 = sbr.rel (0) target = $region13
    $region12: #{tpu_custom_call.1} parent=1 // pred_region
      %40 = vsyncadd [#allocation6], 0
      %s42 = sshll.u32 %s2, 4
      %s43 = int_to_ptr.hbm [resolvable:$true] %s42
      %s44 = sshll.u32 [#allocation7], 4
      %s45 = int_to_ptr.vmem [resolvable:$true] %s44
      %47 = dma.hbm_to_vmem [thread:$0]  %s43, 64, %s45, [#allocation6]
    $region13: #{tpu_custom_call.1} parent=1 // pred_fallthru
      _
    // Predicated region
    $region14: #{tpu_custom_call.1} parent=1 // pred_check
      _
    $region15: #{tpu_custom_call.1} parent=1 // pred_check_branch
      %49 = sbr.rel (0) target = $region17
    $region16: #{tpu_custom_call.1} parent=1 // pred_region
      %51 = dma.done [#allocation3], 256
    $region17: #{tpu_custom_call.1} parent=1 // pred_fallthru
      _
    // Predicated region
    $region18: #{tpu_custom_call.1} parent=1 // pred_check
      _
    $region19: #{tpu_custom_call.1} parent=1 // pred_check_branch
      %53 = sbr.rel (0) target = $region21
    $region20: #{tpu_custom_call.1} parent=1 // pred_region
      %55 = dma.done [#allocation6], 2048
    $region21: #{tpu_custom_call.1} parent=1 // pred_fallthru
      _
    // Predicated region
    $region22: #{tpu_custom_call.1} parent=1 // pred_check
      _
    $region23: #{tpu_custom_call.1} parent=1 // pred_check_branch
      %57 = sbr.rel (0) target = $region25
    $region24: #{tpu_custom_call.1} parent=1 // pred_region
      %59 = dma.done [#allocation6], 64
    $region25: #{tpu_custom_call.1} parent=1 // pred_fallthru
      _
    %v60 = vld [vmem:[#allocation2] sm:$0xff]
    %v61 = vld [vmem:[#allocation2 + $0x8] sm:$0xff]
    %v62 = vld [vmem:[#allocation5] sm:$0xff]
    %v63 = vld [vmem:[#allocation5 + $0x8] sm:$0xff]
    %v64 = vld [vmem:[#allocation5 + $0x10] sm:$0xff]
    %v65 = vld [vmem:[#allocation5 + $0x18] sm:$0xff]
    %v66 = vld [vmem:[#allocation7] sm:$0x1]
    %v67 = vperm.slane %v66, 0
    %vm68 = vcmask 261120
    %v70 = vsel %vm68, %v60, 0
    %v73 = vsel %vm68, %v61, 0
    %75 = vmatpush.msra.mxu0 0.0
    %76 = vmatpush.msra.mxu0 0.0
    %77 = vmatpush.msra.mxu0 0.0
    %78 = vmatpush.msra.mxu0 0.0
    %79 = vmatpush.msra.mxu0 0.0
    %80 = vmatpush.msra.mxu0 0.0
    %81 = vmatpush.msra.mxu0 0.0
    %82 = vmatpush.msra.mxu0 0.0
    %83 = vmatpush.msra.mxu0 0.0
    %84 = vmatpush.msra.mxu0 0.0
    %85 = vmatpush.msra.mxu0 0.0
    %86 = vmatpush.msra.mxu0 0.0
    %87 = vmatpush.msra.mxu0 %v65
    %88 = vmatpush.msra.mxu0 %v64
    %89 = vmatpush.msra.mxu0 %v63
    %90 = vmatpush.msra.mxu0 %v62
    %91 = vmatmul.f32.gmra.mxu0 %v70
    %v92 = vpop.f32.mrf.mxu0
    %v93 = vadd.f32 %v67, %v92
    %94 = vmatmul.f32.gmra.mxu0 %v73
    %v95 = vpop.f32.mrf.mxu0
    %v96 = vadd.f32 %v67, %v95
    %97 = vdwg.mxu0
    %v98 = vmax.f32 %v93, 0.0
    %v99 = vmax.f32 %v96, 0.0
    %s100 = scalar_lea.vmem [#allocation5], 32
    %v101 = vld [vmem:[%s100] sm:$0xff]
    %v102 = vld [vmem:[%s100 + $0x8] sm:$0xff]
    %v103 = vld [vmem:[%s100 + $0x10] sm:$0xff]
    %v104 = vld [vmem:[%s100 + $0x18] sm:$0xff]
    %v105 = vld [vmem:[#allocation7 + $0x1] sm:$0x1]
    %v106 = vperm.slane %v105, 0
    %v108 = vsel %vm68, %v98, 0
    %v111 = vsel %vm68, %v99, 0
    %113 = vmatpush.msra.mxu0 0.0
    %114 = vmatpush.msra.mxu0 0.0
    %115 = vmatpush.msra.mxu0 0.0
    %116 = vmatpush.msra.mxu0 0.0
    %117 = vmatpush.msra.mxu0 0.0
    %118 = vmatpush.msra.mxu0 0.0
    %119 = vmatpush.msra.mxu0 0.0
    %120 = vmatpush.msra.mxu0 0.0
    %121 = vmatpush.msra.mxu0 0.0
    %122 = vmatpush.msra.mxu0 0.0
    %123 = vmatpush.msra.mxu0 0.0
    %124 = vmatpush.msra.mxu0 0.0
    %125 = vmatpush.msra.mxu0 %v104
    %126 = vmatpush.msra.mxu0 %v103
    %127 = vmatpush.msra.mxu0 %v102
    %128 = vmatpush.msra.mxu0 %v101
    %129 = vmatmul.f32.gmra.mxu0 %v108
    %v130 = vpop.f32.mrf.mxu0
    %v131 = vadd.f32 %v106, %v130
    %132 = vmatmul.f32.gmra.mxu0 %v111
    %v133 = vpop.f32.mrf.mxu0
    %v134 = vadd.f32 %v106, %v133
    %135 = vdwg.mxu0
    %v136 = vmax.f32 %v131, 0.0
    %v137 = vmax.f32 %v134, 0.0
    %v138 = vsel %vm68, %v136, -inf
    %v139 = vrot.slane %v138, 4
    %v140 = vmax.f32 %v138, %v139
    %v141 = vrot.slane %v140, 2
    %v142 = vmax.f32 %v140, %v141
    %v143 = vrot.slane %v142, 1
    %v144 = vmax.f32 %v142, %v143
    %v145 = vsel %vm68, %v137, -inf
    %v146 = vrot.slane %v145, 4
    %v147 = vmax.f32 %v145, %v146
    %v148 = vrot.slane %v147, 2
    %v149 = vmax.f32 %v147, %v148
    %v150 = vrot.slane %v149, 1
    %v151 = vmax.f32 %v149, %v150
    %s152 = scalar_lea.vmem [#allocation5], 64
    %v153 = vld [vmem:[%s152] sm:$0xff]
    %v154 = vld [vmem:[%s152 + $0x8] sm:$0xff]
    %v155 = vld [vmem:[%s152 + $0x10] sm:$0xff]
    %v156 = vld [vmem:[%s152 + $0x18] sm:$0xff]
    %v157 = vld [vmem:[#allocation7 + $0x2] sm:$0x1]
    %v158 = vperm.slane %v157, 0
    %vm161 = vcmask 1041409
    %v162 = vsel %vm161, %v151, %v144
    %v163 = vsel %vm68, %v162, 0
    %165 = vmatpush.msra.mxu0 0.0
    %166 = vmatpush.msra.mxu0 0.0
    %167 = vmatpush.msra.mxu0 0.0
    %168 = vmatpush.msra.mxu0 0.0
    %169 = vmatpush.msra.mxu0 0.0
    %170 = vmatpush.msra.mxu0 0.0
    %171 = vmatpush.msra.mxu0 0.0
    %172 = vmatpush.msra.mxu0 0.0
    %173 = vmatpush.msra.mxu0 0.0
    %174 = vmatpush.msra.mxu0 0.0
    %175 = vmatpush.msra.mxu0 0.0
    %176 = vmatpush.msra.mxu0 0.0
    %177 = vmatpush.msra.mxu0 %v156
    %178 = vmatpush.msra.mxu0 %v155
    %179 = vmatpush.msra.mxu0 %v154
    %180 = vmatpush.msra.mxu0 %v153
    %181 = vmatmul.f32.gmra.mxu0 %v163
    %v182 = vpop.f32.mrf.mxu0
    %v183 = vadd.f32 %v158, %v182
    %184 = vdwg.mxu0
    %v185 = vmax.f32 %v183, 0.0
    %s186 = scalar_lea.vmem [#allocation5], 96
    %v187 = vld [vmem:[%s186] sm:$0xff]
    %v188 = vld [vmem:[%s186 + $0x8] sm:$0xff]
    %v189 = vld [vmem:[%s186 + $0x10] sm:$0xff]
    %v190 = vld [vmem:[%s186 + $0x18] sm:$0xff]
    %v191 = vld [vmem:[#allocation7 + $0x3] sm:$0x1]
    %v192 = vperm.slane %v191, 0
    %v194 = vsel %vm68, %v185, 0
    %196 = vmatpush.msra.mxu0 0.0
    %197 = vmatpush.msra.mxu0 0.0
    %198 = vmatpush.msra.mxu0 0.0
    %199 = vmatpush.msra.mxu0 0.0
    %200 = vmatpush.msra.mxu0 0.0
    %201 = vmatpush.msra.mxu0 0.0
    %202 = vmatpush.msra.mxu0 0.0
    %203 = vmatpush.msra.mxu0 0.0
    %204 = vmatpush.msra.mxu0 0.0
    %205 = vmatpush.msra.mxu0 0.0
    %206 = vmatpush.msra.mxu0 0.0
    %207 = vmatpush.msra.mxu0 0.0
    %208 = vmatpush.msra.mxu0 %v190
    %209 = vmatpush.msra.mxu0 %v189
    %210 = vmatpush.msra.mxu0 %v188
    %211 = vmatpush.msra.mxu0 %v187
    %212 = vmatmul.f32.gmra.mxu0 %v194
    %v213 = vpop.f32.mrf.mxu0
    %v214 = vadd.f32 %v192, %v213
    %215 = vdwg.mxu0
    %vm216 = vcmask 254976
    %217 = vst.msk [vmem:[#allocation8] sm:$0x3] %vm216, %v214
    // Predicated region
    $region26: #{tpu_custom_call.1} parent=1 // pred_check
      _
    $region27: #{tpu_custom_call.1} parent=1 // pred_check_branch
      %219 = sbr.rel (0) target = $region29
    $region28: #{tpu_custom_call.1} parent=1 // pred_region
      %221 = vsyncadd [#allocation4], 0
      %s223 = sshll.u32 [#allocation8], 4
      %s224 = int_to_ptr.vmem [resolvable:$true] %s223
      %s225 = sshll.u32 %s3, 4
      %s226 = int_to_ptr.hbm [resolvable:$true] %s225
      %228 = dma.vmem_to_hbm [thread:$0]  %s224, 32, %s226, [#allocation4]
    $region29: #{tpu_custom_call.1} parent=1 // pred_fallthru
      _
    // Predicated region
    $region30: #{tpu_custom_call.1} parent=1 // pred_check
      _
    $region31: #{tpu_custom_call.1} parent=1 // pred_check_branch
      %230 = sbr.rel (0) target = $region33
    $region32: #{tpu_custom_call.1} parent=1 // pred_region
      %232 = dma.done [#allocation4], 32
    $region33: #{tpu_custom_call.1} parent=1 // pred_fallthru
      _
    %233 = vsyncpa [#allocation3], 1
    %234 = vsyncpa [#allocation6], 1
    %235 = vsyncpa [#allocation4], 1

</llo_original>
